<compile_context>
chip_gen: v7x
topology: tpu7x:2x2x1
jax: 0.10.0
libtpu: 0.0.40
codegen_flags: <defaults>
</compile_context>

<pallas_src>
import functools

import jax
import jax.numpy as jnp
from jax.experimental import pallas as pl
from jax.experimental.pallas import tpu as pltpu


def mlp_kernel(params_ref, x_ref, o_ref):
    # params_ref (SMEM, f32[9]):
    #   [w1_00, w1_01, w1_10, w1_11, b1_0, b1_1, w2_0, w2_1, b2]
    #   w1 stored as (in, out) row-major; w2 stored as (in, out) = (2, 1).
    # x_ref: (2, TILE_B)  -- features on sublanes, batch on lanes.
    # o_ref: (1, TILE_B)
    w1_00 = params_ref[0]
    w1_01 = params_ref[1]
    w1_10 = params_ref[2]
    w1_11 = params_ref[3]
    b1_0 = params_ref[4]
    b1_1 = params_ref[5]
    w2_0 = params_ref[6]
    w2_1 = params_ref[7]
    b2_0 = params_ref[8]

    x0 = x_ref[0:1, :]  # (1, TILE_B)
    x1 = x_ref[1:2, :]  # (1, TILE_B)

    # fc1 + ReLU: pure VPU (scalar-broadcast mul/add + max), no MXU.
    h0 = jnp.maximum(x0 * w1_00 + x1 * w1_10 + b1_0, 0.0)
    h1 = jnp.maximum(x0 * w1_01 + x1 * w1_11 + b1_1, 0.0)
    # fc2
    y = h0 * w2_0 + h1 * w2_1 + b2_0
    o_ref[...] = y.astype(o_ref.dtype)


def _round_up(n, m):
    return ((n + m - 1) // m) * m


@functools.partial(jax.jit, static_argnames=("max_tile_b",))
def mlp_forward(x, w1, b1, w2, b2, *, max_tile_b=1024):
    """x:(B,2) f32, w1:(2,2) [in,out], b1:(2,), w2:(2,1) [in,out], b2:(1,) -> (B,1)."""
    B, f_in = x.shape
    assert f_in == 2 and w1.shape == (2, 2) and w2.shape == (2, 1)

    # Batch tile: multiple of 128 lanes; modest VMEM footprint on every chip.
    tile_b = min(max_tile_b, _round_up(B, 128))
    b_pad = _round_up(B, tile_b)
    grid = (b_pad // tile_b,)

    # Lane-dense layout: batch on the last (lane) axis.
    x_pad = jnp.pad(x.astype(jnp.float32), ((0, b_pad - B), (0, 0)))
    x_t = x_pad.T  # (2, B_pad)

    # Pack all 9 parameters into one SMEM-resident scalar table.
    params = jnp.concatenate(
        [w1.reshape(-1), b1.reshape(-1), w2.reshape(-1), b2.reshape(-1)]
    ).astype(jnp.float32)  # (9,)

    out_t = pl.pallas_call(
        mlp_kernel,
        out_shape=jax.ShapeDtypeStruct((1, b_pad), x.dtype),
        grid=grid,
        in_specs=[
            # Whole parameter vector, resident in SMEM across all grid steps.
            pl.BlockSpec(memory_space=pltpu.MemorySpace.SMEM),
            # Tiled activations (default memory space for blocked specs: VMEM).
            pl.BlockSpec((2, tile_b), lambda i: (0, i)),
        ],
        out_specs=pl.BlockSpec((1, tile_b), lambda i: (0, i)),
        compiler_params=pltpu.CompilerParams(
            dimension_semantics=("parallel",),
        ),
    )(params, x_t)

    return out_t[0, :B].reshape(B, 1)


def torch_style_linear_init(key, out_features, in_features):
    """Deterministic init mimicking torch.nn.Linear default (uniform +-1/sqrt(in))."""
    kw, kb = jax.random.split(key)
    bound = 1.0 / (in_features ** 0.5)
    w = jax.random.uniform(kw, (out_features, in_features), jnp.float32, -bound, bound)
    b = jax.random.uniform(kb, (out_features,), jnp.float32, -bound, bound)
    return w, b


if __name__ == "__main__":
    key = jax.random.PRNGKey(0)
    k_x, k_fc1, k_fc2 = jax.random.split(key, 3)

    # PyTorch Linear params: (out_features, in_features); transpose to (in, out).
    w1_t, b1 = torch_style_linear_init(k_fc1, 2, 2)  # fc1
    w2_t, b2 = torch_style_linear_init(k_fc2, 1, 2)  # fc2
    w1 = w1_t.T  # (2, 2)
    w2 = w2_t.T  # (2, 1)

    def ref_fn(x):
        return jnp.maximum(x @ w1 + b1, 0.0) @ w2 + b2

    # Small batch consistent with the module, plus a multi-tile batch to
    # exercise the grid path.
    for batch in (8, 2500):
        kx = jax.random.fold_in(k_x, batch)
        x = jax.random.normal(kx, (batch, 2), jnp.float32)
        out = mlp_forward(x, w1, b1, w2, b2)
        jax.block_until_ready(out)
        assert out.shape == (batch, 1)
        assert jnp.allclose(out, ref_fn(x), atol=1e-5, rtol=1e-5), "mismatch vs reference"

    print("KERNEL_OK")
</pallas_src>

<mosaic_0001>
module attributes {stable_mosaic.version = 11 : i64} {
  func.func @mlp_kernel(%arg0: i32, %arg1: memref<9xf32, #tpu.memory_space<smem>>, %arg2: memref<2x128xf32, #tpu.memory_space<vmem>>, %arg3: memref<1x128xf32, #tpu.memory_space<vmem>>) attributes {dimension_semantics = [#tpu.dimension_semantics<parallel>], iteration_bounds = array<i64: 1>, scalar_prefetch = 0 : i64, scratch_operands = 0 : i64, tpu.core_type = #tpu.core_type<tc>, window_params = [{transform_indices = @transform_0, window_bounds = array<i64: 9>}, {transform_indices = @transform_1, window_bounds = array<i64: 2, 128>}, {transform_indices = @transform_2, window_bounds = array<i64: 1, 128>}]} {
    %c0 = arith.constant 0 : index
    %0 = memref.load %arg1[%c0] : memref<9xf32, #tpu.memory_space<smem>>
    %c1 = arith.constant 1 : index
    %1 = memref.load %arg1[%c1] : memref<9xf32, #tpu.memory_space<smem>>
    %c2 = arith.constant 2 : index
    %2 = memref.load %arg1[%c2] : memref<9xf32, #tpu.memory_space<smem>>
    %c3 = arith.constant 3 : index
    %3 = memref.load %arg1[%c3] : memref<9xf32, #tpu.memory_space<smem>>
    %c4 = arith.constant 4 : index
    %4 = memref.load %arg1[%c4] : memref<9xf32, #tpu.memory_space<smem>>
    %c5 = arith.constant 5 : index
    %5 = memref.load %arg1[%c5] : memref<9xf32, #tpu.memory_space<smem>>
    %c6 = arith.constant 6 : index
    %6 = memref.load %arg1[%c6] : memref<9xf32, #tpu.memory_space<smem>>
    %c7 = arith.constant 7 : index
    %7 = memref.load %arg1[%c7] : memref<9xf32, #tpu.memory_space<smem>>
    %c8 = arith.constant 8 : index
    %8 = memref.load %arg1[%c8] : memref<9xf32, #tpu.memory_space<smem>>
    %c0_0 = arith.constant 0 : index
    %c0_1 = arith.constant 0 : index
    %9 = vector.load %arg2[%c0_0, %c0_1] : memref<2x128xf32, #tpu.memory_space<vmem>>, vector<1x128xf32>
    %c1_2 = arith.constant 1 : index
    %c0_3 = arith.constant 0 : index
    %10 = vector.load %arg2[%c1_2, %c0_3] : memref<2x128xf32, #tpu.memory_space<vmem>>, vector<1x128xf32>
    %11 = vector.broadcast %0 : f32 to vector<1x128xf32>
    %12 = arith.mulf %9, %11 : vector<1x128xf32>
    %13 = vector.broadcast %2 : f32 to vector<1x128xf32>
    %14 = arith.mulf %10, %13 : vector<1x128xf32>
    %15 = arith.addf %12, %14 : vector<1x128xf32>
    %16 = vector.broadcast %4 : f32 to vector<1x128xf32>
    %17 = arith.addf %15, %16 : vector<1x128xf32>
    %cst = arith.constant 0.000000e+00 : f32
    %18 = vector.broadcast %cst : f32 to vector<1x128xf32>
    %19 = arith.maximumf %17, %18 : vector<1x128xf32>
    %20 = vector.broadcast %1 : f32 to vector<1x128xf32>
    %21 = arith.mulf %9, %20 : vector<1x128xf32>
    %22 = vector.broadcast %3 : f32 to vector<1x128xf32>
    %23 = arith.mulf %10, %22 : vector<1x128xf32>
    %24 = arith.addf %21, %23 : vector<1x128xf32>
    %25 = vector.broadcast %5 : f32 to vector<1x128xf32>
    %26 = arith.addf %24, %25 : vector<1x128xf32>
    %cst_4 = arith.constant 0.000000e+00 : f32
    %27 = vector.broadcast %cst_4 : f32 to vector<1x128xf32>
    %28 = arith.maximumf %26, %27 : vector<1x128xf32>
    %29 = vector.broadcast %6 : f32 to vector<1x128xf32>
    %30 = arith.mulf %19, %29 : vector<1x128xf32>
    %31 = vector.broadcast %7 : f32 to vector<1x128xf32>
    %32 = arith.mulf %28, %31 : vector<1x128xf32>
    %33 = arith.addf %30, %32 : vector<1x128xf32>
    %34 = vector.broadcast %8 : f32 to vector<1x128xf32>
    %35 = arith.addf %33, %34 : vector<1x128xf32>
    %c0_5 = arith.constant 0 : index
    %c0_6 = arith.constant 0 : index
    %36 = vector.load %arg3[%c0_5, %c0_6] : memref<1x128xf32, #tpu.memory_space<vmem>>, vector<1x128xf32>
    tpu.vector_store %arg3[%c0_5, %c0_6], %35 {strides = array<i32>} : memref<1x128xf32, #tpu.memory_space<vmem>>, vector<1x128xf32>,
    return
  }
  func.func @transform_0(%arg0: i32) -> i32 {
    %c0_i32 = arith.constant 0 : i32
    %c0_i32_0 = arith.constant 0 : i32
    return %c0_i32 : i32
  }
  func.func @transform_1(%arg0: i32) -> (i32, i32) {
    %c0_i32 = arith.constant 0 : i32
    %c0_i32_0 = arith.constant 0 : i32
    return %c0_i32, %arg0 : i32, i32
  }
  func.func @transform_2(%arg0: i32) -> (i32, i32) {
    %c0_i32 = arith.constant 0 : i32
    %c0_i32_0 = arith.constant 0 : i32
    return %c0_i32, %arg0 : i32, i32
  }
}

</mosaic_0001>

<llo_original>
// kernel: mlp_forward.1
$region0: #{mlp_forward.1}
  #allocation0 [shape = 'u32[]', space=smem, size = 0x4, offset = 0x4, fixed_abs, tag = 'smem constant byte address 0x4 - core index']
  #allocation1 [shape = 'u32[144,128]{1,0:T(1,128)}', space=vmem, size = 0x12000, scoped, tag = 'internal scratch']
  %s0 = inlined_call_operand.vmem [shape: f32[9], index: 0, kind: input, shape index: {}]
  %s1 = inlined_call_operand.vmem [shape: f32[2,128], index: 1, kind: input, shape index: {}]
  %s2 = inlined_call_operand.vmem [shape: f32[1,128], index: 2, kind: output, shape index: {}]
  %s3 = sld [smem:[#allocation0]]
  $region22: #{mlp_forward.1} parent=0
    _
  %s5 = ssub.s32 1, %s3
  %s6 = scalar_select 0, %s5, %s3
  $region1: #{mlp_forward.1} parent=0
    #allocation2 [shape = 'u8[512]{0}', space=smem, size = 0x200, scoped, tag = 'input window, operand 0, single buffered']
    #allocation3 [shape = 's32[1]{0}', space=sflag, size = 0x4, scoped, tag = 'scoped memory for mlp_forward.1']
    %7 = vsyncpa [#allocation3], 0
    // Predicated region
    $region2: #{mlp_forward.1} parent=1 // pred_check
      _
    $region3: #{mlp_forward.1} parent=1 // pred_check_branch
      %9 = sbr.rel (0) target = $region5
    $region4: #{mlp_forward.1} parent=1 // pred_region
      %s11 = ssub.s32 16, 16
      %12 = vsyncadd [#allocation3], %s11
      %s14 = sshll.u32 %s0, 4
      %s15 = int_to_ptr.vmem [resolvable:$true] %s14
      %17 = dma.vmem_to_smem %s15, 16, [#allocation2], [#allocation3]
    $region5: #{mlp_forward.1} parent=1 // pred_fallthru
      _
    // Predicated region
    $region6: #{mlp_forward.1} parent=1 // pred_check
      _
    $region7: #{mlp_forward.1} parent=1 // pred_check_branch
      %19 = sbr.rel (0) target = $region9
    $region8: #{mlp_forward.1} parent=1 // pred_region
      _
    $region9: #{mlp_forward.1} parent=1 // pred_fallthru
      _
    // Predicated region
    $region10: #{mlp_forward.1} parent=1 // pred_check
      _
    $region11: #{mlp_forward.1} parent=1 // pred_check_branch
      %21 = sbr.rel (0) target = $region13
    $region12: #{mlp_forward.1} parent=1 // pred_region
      %22 = dma.done [#allocation3], 16
    $region13: #{mlp_forward.1} parent=1 // pred_fallthru
      _
    %23 = sfence
    %s24 = sld [smem:[#allocation2]]
    %s25 = sld [smem:[#allocation2 + $0x1]]
    %s26 = sld [smem:[#allocation2 + $0x2]]
    %s27 = sld [smem:[#allocation2 + $0x3]]
    %s28 = sld [smem:[#allocation2 + $0x4]]
    %s29 = sld [smem:[#allocation2 + $0x5]]
    %s30 = sld [smem:[#allocation2 + $0x6]]
    %s31 = sld [smem:[#allocation2 + $0x7]]
    %s32 = sld [smem:[#allocation2 + $0x8]]
    %v33 = vld [vmem:[%s1] sm:$0x1]
    %v34 = vld [vmem:[%s1 + $0x1] sm:$0x1]
    %v35 = vstv %s24
    %v36 = vmul.f32 %v33, %v35
    %v37 = vstv %s26
    %v38 = vmul.f32 %v34, %v37
    %v39 = vadd.f32 %v36, %v38
    %v40 = vstv %s28
    %v41 = vadd.f32 %v39, %v40
    %v42 = vmax.f32 %v41, 0.0
    %v43 = vstv %s25
    %v44 = vmul.f32 %v33, %v43
    %v45 = vstv %s27
    %v46 = vmul.f32 %v34, %v45
    %v47 = vadd.f32 %v44, %v46
    %v48 = vstv %s29
    %v49 = vadd.f32 %v47, %v48
    %v50 = vmax.f32 %v49, 0.0
    %v51 = vstv %s30
    %v52 = vmul.f32 %v42, %v51
    %v53 = vstv %s31
    %v54 = vmul.f32 %v50, %v53
    %v55 = vadd.f32 %v52, %v54
    %v56 = vstv %s32
    %v57 = vadd.f32 %v55, %v56
    %58 = vst [vmem:[%s2] sm:$0x1] %v57
    // Predicated region
    $region14: #{mlp_forward.1} parent=1 // pred_check
      _
    $region15: #{mlp_forward.1} parent=1 // pred_check_branch
      %60 = sbr.rel (0) target = $region17
    $region16: #{mlp_forward.1} parent=1 // pred_region
      _
    $region17: #{mlp_forward.1} parent=1 // pred_fallthru
      _
    // Predicated region
    $region18: #{mlp_forward.1} parent=1 // pred_check
      _
    $region19: #{mlp_forward.1} parent=1 // pred_check_branch
      %62 = sbr.rel (0) target = $region21
    $region20: #{mlp_forward.1} parent=1 // pred_region
      _
    $region21: #{mlp_forward.1} parent=1 // pred_fallthru
      _
    %63 = vsyncpa [#allocation3], 1

</llo_original>
